<compile_context>
chip_gen: v5e
topology: v5e:2x2
jax: 0.10.0
libtpu: 0.0.40
codegen_flags: <defaults>
</compile_context>

<pallas_src>
import functools

import jax
import jax.numpy as jnp
from jax.experimental import pallas as pl
from jax.experimental.pallas import tpu as pltpu


def _conv3x3_kernel(x_ref, w_ref, b_ref, o_ref, *, wp, out_len):
    """One batch image per grid step.

    x_ref: (1, Cin, Pp)    bf16  flattened reflection-padded image (+2 tail pad)
    w_ref: (9, Cout, Cin)  bf16  weight, tap-major (k = kh*3 + kw)
    b_ref: (Cout, 1)       f32   bias
    o_ref: (1, Cout, L)    f32   L = H*(W+2); junk columns cropped by the wrapper
    """
    xv = x_ref[0]  # [Cin, Pp] bf16 — single load; 9 shifted views are vreg slices
    acc = None
    for kh in range(3):
        for kw in range(3):
            s = kh * wp + kw                      # static flat shift of this tap
            xs = xv[:, s:s + out_len]             # [Cin, L] bf16 (static slice)
            wk = w_ref[kh * 3 + kw]               # [Cout, Cin] bf16
            p = jnp.dot(wk, xs, preferred_element_type=jnp.float32)  # [Cout, L] f32
            acc = p if acc is None else acc + p
    o_ref[0] = acc + b_ref[...]                   # bias broadcast over lanes


def conv3x3_pallas(x, weight, bias):
    """x: [N, Cin, H, W] f32; weight: [Cout, Cin, 3, 3]; bias: [Cout].
    Returns [N, Cout, H, W] f32 — same semantics as ReflectionPad2d(1)+Conv2d(3x3)."""
    N, Cin, H, W = x.shape
    Cout = weight.shape[0]
    Wp = W + 2
    L = H * Wp                       # flat outputs per image (2 junk cols per row)
    Pp = (H + 2) * Wp + 2            # +2 tail so the (kh=2, kw=2) view stays in bounds

    # --- glue: reflection pad + flatten (pure layout work, no 9x blowup) ---
    x_pad = jnp.pad(x, ((0, 0), (0, 0), (1, 1), (1, 1)), mode="reflect")
    x_flat = x_pad.reshape(N, Cin, (H + 2) * Wp)
    x_flat = jnp.pad(x_flat, ((0, 0), (0, 0), (0, 2)))          # tail pad (values unused)
    x_flat = x_flat.astype(jnp.bfloat16)                        # halve HBM traffic

    # weight [Cout, Cin, 3, 3] -> [9, Cout, Cin] (tap-major), bf16
    w_r = jnp.transpose(weight, (2, 3, 0, 1)).reshape(9, Cout, Cin).astype(jnp.bfloat16)
    b_r = bias.reshape(Cout, 1).astype(jnp.float32)

    kernel = functools.partial(_conv3x3_kernel, wp=Wp, out_len=L)

    flops = 2 * N * 9 * Cin * Cout * L
    bytes_accessed = (N * Cin * Pp * 2) + (9 * Cout * Cin * 2) + (Cout * 4) \
                     + (N * Cout * L * 4)

    out_flat = pl.pallas_call(
        kernel,
        out_shape=jax.ShapeDtypeStruct((N, Cout, L), jnp.float32),
        grid_spec=pltpu.PrefetchScalarGridSpec(
            num_scalar_prefetch=0,
            grid=(N,),
            in_specs=[
                pl.BlockSpec((1, Cin, Pp), lambda n: (n, 0, 0)),     # one padded image
                pl.BlockSpec((9, Cout, Cin), lambda n: (0, 0, 0)),   # grid-invariant weight
                pl.BlockSpec((Cout, 1), lambda n: (0, 0)),           # grid-invariant bias
            ],
            out_specs=pl.BlockSpec((1, Cout, L), lambda n: (n, 0, 0)),  # lane-dense O^T
        ),
        compiler_params=pltpu.CompilerParams(
            dimension_semantics=("parallel",),          # shard batch across TCs (v7x)
            vmem_limit_bytes=32 * 1024 * 1024,          # explicit; safe on v5e/v6e/v7x
        ),
        cost_estimate=pl.CostEstimate(
            flops=flops, transcendentals=0, bytes_accessed=bytes_accessed),
    )(x_flat, w_r, b_r)

    # Crop the 2 junk columns per row from the width-flattening trick; already NCHW.
    return out_flat.reshape(N, Cout, H, Wp)[:, :, :, :W]


def _reference_conv3x3(x, weight, bias):
    x_pad = jnp.pad(x, ((0, 0), (0, 0), (1, 1), (1, 1)), mode="reflect")
    out = jax.lax.conv_general_dilated(
        x_pad, weight,
        window_strides=(1, 1), padding="VALID",
        dimension_numbers=("NCHW", "OIHW", "NCHW"),
    )
    return out + bias.reshape(1, -1, 1, 1)


if __name__ == "__main__":
    key = jax.random.PRNGKey(0)
    k_x, k_w, k_b = jax.random.split(key, 3)

    N, Cin, H, W = 2, 4, 16, 16
    Cout = 8

    x = jax.random.normal(k_x, (N, Cin, H, W), dtype=jnp.float32)
    fan_in = Cin * 3 * 3
    bound = 1.0 / (fan_in ** 0.5)
    weight = jax.random.uniform(k_w, (Cout, Cin, 3, 3), jnp.float32, -bound, bound)
    bias = jax.random.uniform(k_b, (Cout,), jnp.float32, -bound, bound)

    out = jax.block_until_ready(conv3x3_pallas(x, weight, bias))
    assert out.shape == (N, Cout, H, W)

    # Exactness check at the bf16-input precision the kernel streams at.
    ref_bf16_in = _reference_conv3x3(
        x.astype(jnp.bfloat16).astype(jnp.float32),
        weight.astype(jnp.bfloat16).astype(jnp.float32),
        bias,
    )
    assert jnp.allclose(out, ref_bf16_in, atol=1e-3, rtol=1e-3), "mismatch vs bf16-input reference"

    # Semantics check against the full-f32 module (loose tol for bf16 input rounding).
    ref = _reference_conv3x3(x, weight, bias)
    assert jnp.allclose(out, ref, atol=5e-2, rtol=5e-2), "mismatch vs f32 reference conv"

    print("KERNEL_OK")
</pallas_src>

<mosaic_0001>
module attributes {stable_mosaic.version = 11 : i64} {
  func.func @_conv3x3_kernel(%arg0: i32, %arg1: memref<1x4x326xbf16, #tpu.memory_space<vmem>>, %arg2: memref<9x8x4xbf16, #tpu.memory_space<vmem>>, %arg3: memref<8x1xf32, #tpu.memory_space<vmem>>, %arg4: memref<1x8x288xf32, #tpu.memory_space<vmem>>) attributes {dimension_semantics = [#tpu.dimension_semantics<parallel>], iteration_bounds = array<i64: 2>, scalar_prefetch = 0 : i64, scratch_operands = 0 : i64, tpu.core_type = #tpu.core_type<tc>, window_params = [{transform_indices = @transform_0, window_bounds = array<i64: 1, 4, 326>}, {pipeline_mode = #tpu.pipeline_mode<synchronous>, transform_indices = @transform_1, window_bounds = array<i64: 9, 8, 4>}, {pipeline_mode = #tpu.pipeline_mode<synchronous>, transform_indices = @transform_2, window_bounds = array<i64: 8, 1>}, {transform_indices = @transform_3, window_bounds = array<i64: 1, 8, 288>}]} {
    %c0 = arith.constant 0 : index
    %c0_0 = arith.constant 0 : index
    %c0_1 = arith.constant 0 : index
    %0 = vector.load %arg1[%c0, %c0_0, %c0_1] : memref<1x4x326xbf16, #tpu.memory_space<vmem>>, vector<1x4x326xbf16>
    %1 = vector.shape_cast %0 : vector<1x4x326xbf16> to vector<4x326xbf16>
    %2 = vector.extract_strided_slice %1 {offsets = [0, 0], sizes = [4, 288], strides = [1, 1]} : vector<4x326xbf16> to vector<4x288xbf16>
    %c0_2 = arith.constant 0 : index
    %c0_3 = arith.constant 0 : index
    %c0_4 = arith.constant 0 : index
    %3 = vector.load %arg2[%c0_2, %c0_3, %c0_4] : memref<9x8x4xbf16, #tpu.memory_space<vmem>>, vector<1x8x4xbf16>
    %4 = vector.shape_cast %3 : vector<1x8x4xbf16> to vector<8x4xbf16>
    %cst = arith.constant dense<0.000000e+00> : vector<8x288xf32>
    %5 = tpu.matmul %4, %2, %cst {dimension_numbers = #tpu.dot_dimension_numbers<[1], [0], [0], [1], [0, 0, 1, 1], [], []>} : vector<8x4xbf16>, vector<4x288xbf16>, vector<8x288xf32> -> vector<8x288xf32>
    %6 = vector.extract_strided_slice %1 {offsets = [0, 1], sizes = [4, 288], strides = [1, 1]} : vector<4x326xbf16> to vector<4x288xbf16>
    %c1 = arith.constant 1 : index
    %c0_5 = arith.constant 0 : index
    %c0_6 = arith.constant 0 : index
    %7 = vector.load %arg2[%c1, %c0_5, %c0_6] : memref<9x8x4xbf16, #tpu.memory_space<vmem>>, vector<1x8x4xbf16>
    %8 = vector.shape_cast %7 : vector<1x8x4xbf16> to vector<8x4xbf16>
    %cst_7 = arith.constant dense<0.000000e+00> : vector<8x288xf32>
    %9 = tpu.matmul %8, %6, %cst_7 {dimension_numbers = #tpu.dot_dimension_numbers<[1], [0], [0], [1], [0, 0, 1, 1], [], []>} : vector<8x4xbf16>, vector<4x288xbf16>, vector<8x288xf32> -> vector<8x288xf32>
    %10 = arith.addf %5, %9 : vector<8x288xf32>
    %11 = vector.extract_strided_slice %1 {offsets = [0, 2], sizes = [4, 288], strides = [1, 1]} : vector<4x326xbf16> to vector<4x288xbf16>
    %c2 = arith.constant 2 : index
    %c0_8 = arith.constant 0 : index
    %c0_9 = arith.constant 0 : index
    %12 = vector.load %arg2[%c2, %c0_8, %c0_9] : memref<9x8x4xbf16, #tpu.memory_space<vmem>>, vector<1x8x4xbf16>
    %13 = vector.shape_cast %12 : vector<1x8x4xbf16> to vector<8x4xbf16>
    %cst_10 = arith.constant dense<0.000000e+00> : vector<8x288xf32>
    %14 = tpu.matmul %13, %11, %cst_10 {dimension_numbers = #tpu.dot_dimension_numbers<[1], [0], [0], [1], [0, 0, 1, 1], [], []>} : vector<8x4xbf16>, vector<4x288xbf16>, vector<8x288xf32> -> vector<8x288xf32>
    %15 = arith.addf %10, %14 : vector<8x288xf32>
    %16 = vector.extract_strided_slice %1 {offsets = [0, 18], sizes = [4, 288], strides = [1, 1]} : vector<4x326xbf16> to vector<4x288xbf16>
    %c3 = arith.constant 3 : index
    %c0_11 = arith.constant 0 : index
    %c0_12 = arith.constant 0 : index
    %17 = vector.load %arg2[%c3, %c0_11, %c0_12] : memref<9x8x4xbf16, #tpu.memory_space<vmem>>, vector<1x8x4xbf16>
    %18 = vector.shape_cast %17 : vector<1x8x4xbf16> to vector<8x4xbf16>
    %cst_13 = arith.constant dense<0.000000e+00> : vector<8x288xf32>
    %19 = tpu.matmul %18, %16, %cst_13 {dimension_numbers = #tpu.dot_dimension_numbers<[1], [0], [0], [1], [0, 0, 1, 1], [], []>} : vector<8x4xbf16>, vector<4x288xbf16>, vector<8x288xf32> -> vector<8x288xf32>
    %20 = arith.addf %15, %19 : vector<8x288xf32>
    %21 = vector.extract_strided_slice %1 {offsets = [0, 19], sizes = [4, 288], strides = [1, 1]} : vector<4x326xbf16> to vector<4x288xbf16>
    %c4 = arith.constant 4 : index
    %c0_14 = arith.constant 0 : index
    %c0_15 = arith.constant 0 : index
    %22 = vector.load %arg2[%c4, %c0_14, %c0_15] : memref<9x8x4xbf16, #tpu.memory_space<vmem>>, vector<1x8x4xbf16>
    %23 = vector.shape_cast %22 : vector<1x8x4xbf16> to vector<8x4xbf16>
    %cst_16 = arith.constant dense<0.000000e+00> : vector<8x288xf32>
    %24 = tpu.matmul %23, %21, %cst_16 {dimension_numbers = #tpu.dot_dimension_numbers<[1], [0], [0], [1], [0, 0, 1, 1], [], []>} : vector<8x4xbf16>, vector<4x288xbf16>, vector<8x288xf32> -> vector<8x288xf32>
    %25 = arith.addf %20, %24 : vector<8x288xf32>
    %26 = vector.extract_strided_slice %1 {offsets = [0, 20], sizes = [4, 288], strides = [1, 1]} : vector<4x326xbf16> to vector<4x288xbf16>
    %c5 = arith.constant 5 : index
    %c0_17 = arith.constant 0 : index
    %c0_18 = arith.constant 0 : index
    %27 = vector.load %arg2[%c5, %c0_17, %c0_18] : memref<9x8x4xbf16, #tpu.memory_space<vmem>>, vector<1x8x4xbf16>
    %28 = vector.shape_cast %27 : vector<1x8x4xbf16> to vector<8x4xbf16>
    %cst_19 = arith.constant dense<0.000000e+00> : vector<8x288xf32>
    %29 = tpu.matmul %28, %26, %cst_19 {dimension_numbers = #tpu.dot_dimension_numbers<[1], [0], [0], [1], [0, 0, 1, 1], [], []>} : vector<8x4xbf16>, vector<4x288xbf16>, vector<8x288xf32> -> vector<8x288xf32>
    %30 = arith.addf %25, %29 : vector<8x288xf32>
    %31 = vector.extract_strided_slice %1 {offsets = [0, 36], sizes = [4, 288], strides = [1, 1]} : vector<4x326xbf16> to vector<4x288xbf16>
    %c6 = arith.constant 6 : index
    %c0_20 = arith.constant 0 : index
    %c0_21 = arith.constant 0 : index
    %32 = vector.load %arg2[%c6, %c0_20, %c0_21] : memref<9x8x4xbf16, #tpu.memory_space<vmem>>, vector<1x8x4xbf16>
    %33 = vector.shape_cast %32 : vector<1x8x4xbf16> to vector<8x4xbf16>
    %cst_22 = arith.constant dense<0.000000e+00> : vector<8x288xf32>
    %34 = tpu.matmul %33, %31, %cst_22 {dimension_numbers = #tpu.dot_dimension_numbers<[1], [0], [0], [1], [0, 0, 1, 1], [], []>} : vector<8x4xbf16>, vector<4x288xbf16>, vector<8x288xf32> -> vector<8x288xf32>
    %35 = arith.addf %30, %34 : vector<8x288xf32>
    %36 = vector.extract_strided_slice %1 {offsets = [0, 37], sizes = [4, 288], strides = [1, 1]} : vector<4x326xbf16> to vector<4x288xbf16>
    %c7 = arith.constant 7 : index
    %c0_23 = arith.constant 0 : index
    %c0_24 = arith.constant 0 : index
    %37 = vector.load %arg2[%c7, %c0_23, %c0_24] : memref<9x8x4xbf16, #tpu.memory_space<vmem>>, vector<1x8x4xbf16>
    %38 = vector.shape_cast %37 : vector<1x8x4xbf16> to vector<8x4xbf16>
    %cst_25 = arith.constant dense<0.000000e+00> : vector<8x288xf32>
    %39 = tpu.matmul %38, %36, %cst_25 {dimension_numbers = #tpu.dot_dimension_numbers<[1], [0], [0], [1], [0, 0, 1, 1], [], []>} : vector<8x4xbf16>, vector<4x288xbf16>, vector<8x288xf32> -> vector<8x288xf32>
    %40 = arith.addf %35, %39 : vector<8x288xf32>
    %41 = vector.extract_strided_slice %1 {offsets = [0, 38], sizes = [4, 288], strides = [1, 1]} : vector<4x326xbf16> to vector<4x288xbf16>
    %c8 = arith.constant 8 : index
    %c0_26 = arith.constant 0 : index
    %c0_27 = arith.constant 0 : index
    %42 = vector.load %arg2[%c8, %c0_26, %c0_27] : memref<9x8x4xbf16, #tpu.memory_space<vmem>>, vector<1x8x4xbf16>
    %43 = vector.shape_cast %42 : vector<1x8x4xbf16> to vector<8x4xbf16>
    %cst_28 = arith.constant dense<0.000000e+00> : vector<8x288xf32>
    %44 = tpu.matmul %43, %41, %cst_28 {dimension_numbers = #tpu.dot_dimension_numbers<[1], [0], [0], [1], [0, 0, 1, 1], [], []>} : vector<8x4xbf16>, vector<4x288xbf16>, vector<8x288xf32> -> vector<8x288xf32>
    %45 = arith.addf %40, %44 : vector<8x288xf32>
    %c0_29 = arith.constant 0 : index
    %c0_30 = arith.constant 0 : index
    %46 = vector.load %arg3[%c0_29, %c0_30] : memref<8x1xf32, #tpu.memory_space<vmem>>, vector<8x1xf32>
    %47 = vector.broadcast %46 : vector<8x1xf32> to vector<8x288xf32>
    %48 = arith.addf %45, %47 : vector<8x288xf32>
    %c0_31 = arith.constant 0 : index
    %c0_32 = arith.constant 0 : index
    %c0_33 = arith.constant 0 : index
    %49 = vector.load %arg4[%c0_31, %c0_32, %c0_33] : memref<1x8x288xf32, #tpu.memory_space<vmem>>, vector<1x8x288xf32>
    %50 = vector.shape_cast %49 : vector<1x8x288xf32> to vector<8x288xf32>
    %51 = vector.shape_cast %48 : vector<8x288xf32> to vector<1x8x288xf32>
    tpu.vector_store %arg4[%c0_31, %c0_32, %c0_33], %51 {strides = array<i32>} : memref<1x8x288xf32, #tpu.memory_space<vmem>>, vector<1x8x288xf32>,
    return
  }
  func.func @transform_0(%arg0: i32) -> (i32, i32, i32) {
    %c0_i32 = arith.constant 0 : i32
    %c0_i32_0 = arith.constant 0 : i32
    %c0_i32_1 = arith.constant 0 : i32
    return %arg0, %c0_i32, %c0_i32_0 : i32, i32, i32
  }
  func.func @transform_1(%arg0: i32) -> (i32, i32, i32) {
    %c0_i32 = arith.constant 0 : i32
    %c0_i32_0 = arith.constant 0 : i32
    %c0_i32_1 = arith.constant 0 : i32
    %c0_i32_2 = arith.constant 0 : i32
    return %c0_i32, %c0_i32_0, %c0_i32_1 : i32, i32, i32
  }
  func.func @transform_2(%arg0: i32) -> (i32, i32) {
    %c0_i32 = arith.constant 0 : i32
    %c0_i32_0 = arith.constant 0 : i32
    %c0_i32_1 = arith.constant 0 : i32
    return %c0_i32, %c0_i32_0 : i32, i32
  }
  func.func @transform_3(%arg0: i32) -> (i32, i32, i32) {
    %c0_i32 = arith.constant 0 : i32
    %c0_i32_0 = arith.constant 0 : i32
    %c0_i32_1 = arith.constant 0 : i32
    return %arg0, %c0_i32, %c0_i32_0 : i32, i32, i32
  }
}

</mosaic_0001>

<llo_original>
// kernel: tpu_custom_call.1
$region0: #{tpu_custom_call.1}
  #allocation0 [shape = 'u32[]', space=smem, size = 0x4, offset = 0x4, fixed_abs, tag = 'smem constant byte address 0x4 - core index']
  #allocation1 [shape = 'u32[72,128]{1,0:T(1,128)}', space=vmem, size = 0x9000, scoped, tag = 'internal scratch']
  %s0 = inlined_call_operand.vmem [shape: bf16[2,4,326], index: 0, kind: input, shape index: {}]
  %s1 = inlined_call_operand.vmem [shape: bf16[9,8,4], index: 1, kind: input, shape index: {}]
  %s2 = inlined_call_operand.vmem [shape: f32[8,1], index: 2, kind: input, shape index: {}]
  %s3 = inlined_call_operand.hbm [shape: f32[2,8,288], index: 3, kind: output, shape index: {}]
  %s4 = sld [smem:[#allocation0]]
  $region45: #{tpu_custom_call.1} parent=0
    _
  %s6 = ssub.s32 1, %s4
  %s7 = scalar_select 0, %s6, %s4
  $region1: #{tpu_custom_call.1} parent=0
    #allocation2 [shape = 'u8[24576]{0}', space=vmem, size = 0x6000, scoped, tag = 'output window, operand 0']
    #allocation3 [shape = 's32[2]{0}', space=sflag, size = 0x8, scoped, tag = 'scoped memory for tpu_custom_call.1']
    %8 = vsyncpa [#allocation3], 0
    %s9 = scalar_lea.sflag [#allocation3], 1
    %10 = vsyncpa %s9, 0
    loop: start=0, step=1, limit=4
    $region2: #{tpu_custom_call.1} parent=1 // loop_pre_header
      _
    $region3: #{tpu_custom_call.1} parent=1 // loop_header
      %s12 = sphi 0, %s16
      %p13 = scmp.ge.s32.totalorder %s12, 4
      %s22 = sphi 0, %s24
      %s25 = sphi 0, %s22
      %s26 = sphi 0, %s25
      %s42 = sphi 0, %s26
      %s46 = sphi 0, %s46
      %s48 = sphi 0, %s46
      %s49 = sphi 0, %s48
      %s63 = sphi 0, %s49
      %s67 = sphi 0, %s67
      %s69 = sphi 0, %s67
      %s70 = sphi 0, %s69
      %s84 = sphi 0, %s70
      %s90 = sphi 0, %s92
      %s93 = sphi 0, %s90
      %s94 = sphi 0, %s93
      %s110 = sphi 0, %s94
    $region4: #{tpu_custom_call.1} parent=1 // loop_header_branch
      %15 = sbr.rel (%p13) target = $region8
    $region5: #{tpu_custom_call.1} parent=1 // loop_body
      %s17 = ssub.s32 %s12, 1
      %s18 = ssub.s32 %s12, 2
      %s19 = sadd.s32 %s12, 1
      %s20 = ssub.s32 %s12, %s19
      %p21 = scmp.eq.s32.totalorder %s20, 0
      %s23 = sadd.s32 %s22, 1
      %s24 = scalar_select %p21, %s22, %s23
      %p27 = pneg %p21
      %p28 = scmp.eq.s32.totalorder %s12, 1
      %p29 = por %p27, %p28
      %p30 = scmp.ne.s32.totalorder %s22, %s25
      %p31 = scmp.eq.s32.totalorder %s12, 0
      %p32 = por %p30, %p31
      %p33 = scmp.ne.s32.totalorder %s22, %s25
      %p34 = scmp.eq.s32.totalorder %s17, 1
      %p35 = por %p33, %p34
      %p36 = scmp.ne.s32.totalorder %s25, %s26
      %p37 = scmp.eq.s32.totalorder %s17, 0
      %p38 = por %p36, %p37
      %p39 = scmp.ne.s32.totalorder %s25, %s26
      %p40 = scmp.eq.s32.totalorder %s18, 1
      %p41 = por %p39, %p40
      %p43 = scmp.ne.s32.totalorder %s26, %s42
      %p44 = scmp.eq.s32.totalorder %s18, 0
      %p45 = por %p43, %p44
      %s47 = sadd.s32 %s46, 1
      %p50 = scmp.eq.s32.totalorder %s12, 1
      %p51 = scmp.ne.s32.totalorder %s46, %s48
      %p52 = scmp.eq.s32.totalorder %s12, 0
      %p53 = por %p51, %p52
      %p54 = scmp.ne.s32.totalorder %s46, %s48
      %p55 = scmp.eq.s32.totalorder %s17, 1
      %p56 = por %p54, %p55
      %p57 = scmp.ne.s32.totalorder %s48, %s49
      %p58 = scmp.eq.s32.totalorder %s17, 0
      %p59 = por %p57, %p58
      %p60 = scmp.ne.s32.totalorder %s48, %s49
      %p61 = scmp.eq.s32.totalorder %s18, 1
      %p62 = por %p60, %p61
      %p64 = scmp.ne.s32.totalorder %s49, %s63
      %p65 = scmp.eq.s32.totalorder %s18, 0
      %p66 = por %p64, %p65
      %s68 = sadd.s32 %s67, 1
      %p71 = scmp.eq.s32.totalorder %s12, 1
      %p72 = scmp.ne.s32.totalorder %s67, %s69
      %p73 = scmp.eq.s32.totalorder %s12, 0
      %p74 = por %p72, %p73
      %p75 = scmp.ne.s32.totalorder %s67, %s69
      %p76 = scmp.eq.s32.totalorder %s17, 1
      %p77 = por %p75, %p76
      %p78 = scmp.ne.s32.totalorder %s69, %s70
      %p79 = scmp.eq.s32.totalorder %s17, 0
      %p80 = por %p78, %p79
      %p81 = scmp.ne.s32.totalorder %s69, %s70
      %p82 = scmp.eq.s32.totalorder %s18, 1
      %p83 = por %p81, %p82
      %p85 = scmp.ne.s32.totalorder %s70, %s84
      %p86 = scmp.eq.s32.totalorder %s18, 0
      %p87 = por %p85, %p86
      %s88 = ssub.s32 %s12, %s19
      %p89 = scmp.eq.s32.totalorder %s88, 0
      %s91 = sadd.s32 %s90, 1
      %s92 = scalar_select %p89, %s90, %s91
      %p95 = pneg %p89
      %p96 = scmp.eq.s32.totalorder %s12, 1
      %p97 = por %p95, %p96
      %p98 = scmp.ne.s32.totalorder %s90, %s93
      %p99 = scmp.eq.s32.totalorder %s12, 0
      %p100 = por %p98, %p99
      %p101 = scmp.ne.s32.totalorder %s90, %s93
      %p102 = scmp.eq.s32.totalorder %s17, 1
      %p103 = por %p101, %p102
      %p104 = scmp.ne.s32.totalorder %s93, %s94
      %p105 = scmp.eq.s32.totalorder %s17, 0
      %p106 = por %p104, %p105
      %p107 = scmp.ne.s32.totalorder %s93, %s94
      %p108 = scmp.eq.s32.totalorder %s18, 1
      %p109 = por %p107, %p108
      %p111 = scmp.ne.s32.totalorder %s94, %s110
      %p112 = scmp.eq.s32.totalorder %s18, 0
      %p113 = por %p111, %p112
      %p114 = scmp.le.s32.totalorder 1, %s12
      %p115 = scmp.lt.s32.totalorder %s12, 3
      %p116 = pnand %p114, %p115
      %p117 = pneg %p116
      // Predicated region
      $region9: #{tpu_custom_call.1} parent=5 // pred_check
        _
      $region10: #{tpu_custom_call.1} parent=5 // pred_check_branch
        %119 = sbr.rel (%p116) target = $region12
      $region11: #{tpu_custom_call.1} parent=5 // pred_region
        %s120 = ssub.s32 %s12, 1
        // Predicated region
        $region13: #{tpu_custom_call.1} parent=11 // pred_check
          %p121 = pneg %p59
        $region14: #{tpu_custom_call.1} parent=11 // pred_check_branch
          %123 = sbr.rel (%p121) target = $region16
        $region15: #{tpu_custom_call.1} parent=11 // pred_region
          _
        $region16: #{tpu_custom_call.1} parent=11 // pred_fallthru
          _
        // Predicated region
        $region17: #{tpu_custom_call.1} parent=11 // pred_check
          %p124 = pneg %p80
        $region18: #{tpu_custom_call.1} parent=11 // pred_check_branch
          %126 = sbr.rel (%p124) target = $region20
        $region19: #{tpu_custom_call.1} parent=11 // pred_region
          _
        $region20: #{tpu_custom_call.1} parent=11 // pred_fallthru
          _
      $region12: #{tpu_custom_call.1} parent=5 // pred_fallthru
        _
      %p127 = scmp.lt.s32.totalorder %s12, 2
      // Predicated region
      $region21: #{tpu_custom_call.1} parent=5 // pred_check
        %p128 = pneg %p127
      $region22: #{tpu_custom_call.1} parent=5 // pred_check_branch
        %130 = sbr.rel (%p128) target = $region24
      $region23: #{tpu_custom_call.1} parent=5 // pred_region
        // Predicated region
        $region25: #{tpu_custom_call.1} parent=23 // pred_check
          %p131 = pneg %p32
        $region26: #{tpu_custom_call.1} parent=23 // pred_check_branch
          %133 = sbr.rel (%p131) target = $region28
        $region27: #{tpu_custom_call.1} parent=23 // pred_region
          %p134 = scmp.lt.s32.totalorder %s12, 1
          %s135 = scalar_select %p134, %s12, 1
          %s136 = smul.addr %s135, 3
          %s137 = smul.addr %s136, 2
          %s138 = scalar_lea.vmem %s0, %s137
        $region28: #{tpu_custom_call.1} parent=23 // pred_fallthru
          _
      $region24: #{tpu_custom_call.1} parent=5 // pred_fallthru
        _
      %p139 = scmp.le.s32.totalorder 1, %s12
      %p140 = scmp.lt.s32.totalorder %s12, 3
      %p141 = pnand %p139, %p140
      %p142 = pneg %p141
      // Predicated region
      $region29: #{tpu_custom_call.1} parent=5 // pred_check
        _
      $region30: #{tpu_custom_call.1} parent=5 // pred_check_branch
        %144 = sbr.rel (%p141) target = $region32
      $region31: #{tpu_custom_call.1} parent=5 // pred_region
        %s145 = ssub.s32 %s12, 1
        %p146 = scmp.lt.s32.totalorder %s17, 1
        %s147 = scalar_select %p146, %s17, 1
        %s148 = smul.addr %s147, 3
        %s149 = smul.addr %s148, 2
        %s150 = scalar_lea.vmem %s0, %s149
        %p151 = pneg %p38
        %p152 = pneg %p35
        %p153 = pneg %p59
        %p154 = pneg %p56
        %p155 = pneg %p80
        %p156 = pneg %p77
        %p157 = pneg %p106
        %p158 = pneg %p103
        %s159 = sand.u32 %s93, 1
        %s160 = scalar_lea.sflag [#allocation3], %s159
        %s161 = sand.u32 %s93, 1
        %s162 = smul.addr %s161, 24
        %s163 = scalar_lea.vmem [#allocation2], %s162
        %p164 = scmp.lt.s32.totalorder %s17, 1
        %s165 = scalar_select %p164, %s17, 1
        %s166 = smul.addr %s165, 3
        %s167 = smul.addr %s166, 2
        %s168 = scalar_lea.vmem %s0, %s167
        %v170 = vld [vmem:[%s168] sm:$0x3f]
        %v171 = vld [vmem:[%s1] sm:$0xf]
        %s172 = scalar_lea.vmem %s1, 4
        %v173 = vld [vmem:[%s172] sm:$0xf]
        %175 = vst [vmem:[#allocation1] ss:$4 sm:$0xff] %v170
        %v176 = vld.sshfl [vmem:[#allocation1] sm:$0xff pattern:$0x73625140]
        %v178 = vld.sshfl [vmem:[#allocation1 + $0x8] sm:$0xff pattern:$0x73625140]
        %v180 = vld.sshfl [vmem:[#allocation1 + $0x10] sm:$0xff pattern:$0x73625140]
        %182 = vrot.lane.b32.xlu0 %v176, 127
        %v183 = vpop.permute.xlu0 %182
        %184 = vrot.lane.b32.xlu0 %v178, 127
        %v185 = vpop.permute.xlu0 %184
        %186 = vrot.lane.b32.xlu0 %v180, 127
        %v187 = vpop.permute.xlu0 %186
        %vm188 = vcmask 1039360
        %v189 = vsel %vm188, %v183, %v185
        %v190 = vsel %vm188, %v185, %v187
        %vm191 = vcmask 31744
        %v193 = vsel %vm191, %v173, 0
        %vm195 = vcmask 1041408
        %v197 = vsel %vm195, %v189, 0
        %v200 = vsel %vm195, %v190, 0
        %v203 = vsel %vm195, %v187, 0
        %205 = vmatpush.bf16.msra.mxu0 0
        %206 = vmatpush.bf16.msra.mxu0 0
        %207 = vmatpush.bf16.msra.mxu0 0
        %208 = vmatpush.bf16.msra.mxu0 0
        %209 = vmatpush.bf16.msra.mxu0 0
        %210 = vmatpush.bf16.msra.mxu0 0
        %211 = vmatpush.bf16.msra.mxu0 0
        %212 = vmatpush.bf16.msra.mxu0 %v197
        %213 = vmatmul.bf16.gmra.mxu0 %v193
        %v214 = vpop.f32.mrf.mxu0
        %v215 = vadd.f32 0.0, %v214
        %v216 = vpop.f32.mrf.mxu0
        %217 = vdwg.mxu0
        %218 = vmatpush.bf16.msra.mxu0 0
        %219 = vmatpush.bf16.msra.mxu0 0
        %220 = vmatpush.bf16.msra.mxu0 0
        %221 = vmatpush.bf16.msra.mxu0 0
        %222 = vmatpush.bf16.msra.mxu0 0
        %223 = vmatpush.bf16.msra.mxu0 0
        %224 = vmatpush.bf16.msra.mxu0 0
        %225 = vmatpush.bf16.msra.mxu0 %v200
        %226 = vmatmul.bf16.gmra.mxu0 %v193
        %v227 = vpop.f32.mrf.mxu0
        %v228 = vadd.f32 0.0, %v227
        %v229 = vpop.f32.mrf.mxu0
        %230 = vdwg.mxu0
        %231 = vmatpush.bf16.msra.mxu0 0
        %232 = vmatpush.bf16.msra.mxu0 0
        %233 = vmatpush.bf16.msra.mxu0 0
        %234 = vmatpush.bf16.msra.mxu0 0
        %235 = vmatpush.bf16.msra.mxu0 0
        %236 = vmatpush.bf16.msra.mxu0 0
        %237 = vmatpush.bf16.msra.mxu0 0
        %238 = vmatpush.bf16.msra.mxu0 %v203
        %239 = vmatmul.bf16.gmra.mxu0 %v193
        %v240 = vpop.f32.mrf.mxu0
        %v241 = vadd.f32 0.0, %v240
        %v242 = vpop.f32.mrf.mxu0
        %243 = vdwg.mxu0
        %244 = vst [vmem:[#allocation1] ss:$4 sm:$0xff] %v170
        %v245 = vld.sshfl [vmem:[#allocation1] sm:$0xff pattern:$0x73625140]
        %v246 = vld.sshfl [vmem:[#allocation1 + $0x8] sm:$0xff pattern:$0x73625140]
        %v247 = vld.sshfl [vmem:[#allocation1 + $0x10] sm:$0xff pattern:$0x73625140]
        %v249 = vsel %vm191, %v171, 0
        %v251 = vsel %vm195, %v245, 0
        %v253 = vsel %vm195, %v246, 0
        %v255 = vsel %vm195, %v247, 0
        %257 = vmatpush.bf16.msra.mxu0 0
        %258 = vmatpush.bf16.msra.mxu0 0
        %259 = vmatpush.bf16.msra.mxu0 0
        %260 = vmatpush.bf16.msra.mxu0 0
        %261 = vmatpush.bf16.msra.mxu0 0
        %262 = vmatpush.bf16.msra.mxu0 0
        %263 = vmatpush.bf16.msra.mxu0 0
        %264 = vmatpush.bf16.msra.mxu0 %v251
        %265 = vmatmul.bf16.gmra.mxu0 %v249
        %v266 = vpop.f32.mrf.mxu0
        %v267 = vadd.f32 %v215, %v266
        %v268 = vpop.f32.mrf.mxu0
        %269 = vdwg.mxu0
        %270 = vmatpush.bf16.msra.mxu0 0
        %271 = vmatpush.bf16.msra.mxu0 0
        %272 = vmatpush.bf16.msra.mxu0 0
        %273 = vmatpush.bf16.msra.mxu0 0
        %274 = vmatpush.bf16.msra.mxu0 0
        %275 = vmatpush.bf16.msra.mxu0 0
        %276 = vmatpush.bf16.msra.mxu0 0
        %277 = vmatpush.bf16.msra.mxu0 %v253
        %278 = vmatmul.bf16.gmra.mxu0 %v249
        %v279 = vpop.f32.mrf.mxu0
        %v280 = vadd.f32 %v228, %v279
        %v281 = vpop.f32.mrf.mxu0
        %282 = vdwg.mxu0
        %283 = vmatpush.bf16.msra.mxu0 0
        %284 = vmatpush.bf16.msra.mxu0 0
        %285 = vmatpush.bf16.msra.mxu0 0
        %286 = vmatpush.bf16.msra.mxu0 0
        %287 = vmatpush.bf16.msra.mxu0 0
        %288 = vmatpush.bf16.msra.mxu0 0
        %289 = vmatpush.bf16.msra.mxu0 0
        %290 = vmatpush.bf16.msra.mxu0 %v255
        %291 = vmatmul.bf16.gmra.mxu0 %v249
        %v292 = vpop.f32.mrf.mxu0
        %v293 = vadd.f32 %v241, %v292
        %v294 = vpop.f32.mrf.mxu0
        %295 = vdwg.mxu0
        %s296 = scalar_lea.vmem %s1, 8
        %v297 = vld [vmem:[%s296] sm:$0xf]
        %298 = vst [vmem:[#allocation1] ss:$4 sm:$0xff] %v170
        %v299 = vld.sshfl [vmem:[#allocation1] sm:$0xff pattern:$0x73625140]
        %v301 = vld.sshfl [vmem:[#allocation1 + $0x8] sm:$0xff pattern:$0x73625140]
        %v303 = vld.sshfl [vmem:[#allocation1 + $0x10] sm:$0xff pattern:$0x73625140]
        %305 = vrot.lane.b32.xlu0 %v299, 126
        %v306 = vpop.permute.xlu0 %305
        %307 = vrot.lane.b32.xlu0 %v301, 126
        %v308 = vpop.permute.xlu0 %307
        %309 = vrot.lane.b32.xlu0 %v303, 126
        %v310 = vpop.permute.xlu0 %309
        %vm311 = vcmask 1031168
        %v312 = vsel %vm311, %v306, %v308
        %v313 = vsel %vm311, %v308, %v310
        %v315 = vsel %vm191, %v297, 0
        %v318 = vsel %vm195, %v312, 0
        %v321 = vsel %vm195, %v313, 0
        %v324 = vsel %vm195, %v310, 0
        %326 = vmatpush.bf16.msra.mxu0 0
        %327 = vmatpush.bf16.msra.mxu0 0
        %328 = vmatpush.bf16.msra.mxu0 0
        %329 = vmatpush.bf16.msra.mxu0 0
        %330 = vmatpush.bf16.msra.mxu0 0
        %331 = vmatpush.bf16.msra.mxu0 0
        %332 = vmatpush.bf16.msra.mxu0 0
        %333 = vmatpush.bf16.msra.mxu0 %v318
        %334 = vmatmul.bf16.gmra.mxu0 %v315
        %v335 = vpop.f32.mrf.mxu0
        %v336 = vadd.f32 0.0, %v335
        %v337 = vpop.f32.mrf.mxu0
        %338 = vdwg.mxu0
        %339 = vmatpush.bf16.msra.mxu0 0
        %340 = vmatpush.bf16.msra.mxu0 0
        %341 = vmatpush.bf16.msra.mxu0 0
        %342 = vmatpush.bf16.msra.mxu0 0
        %343 = vmatpush.bf16.msra.mxu0 0
        %344 = vmatpush.bf16.msra.mxu0 0
        %345 = vmatpush.bf16.msra.mxu0 0
        %346 = vmatpush.bf16.msra.mxu0 %v321
        %347 = vmatmul.bf16.gmra.mxu0 %v315
        %v348 = vpop.f32.mrf.mxu0
        %v349 = vadd.f32 0.0, %v348
        %v350 = vpop.f32.mrf.mxu0
        %351 = vdwg.mxu0
        %352 = vmatpush.bf16.msra.mxu0 0
        %353 = vmatpush.bf16.msra.mxu0 0
        %354 = vmatpush.bf16.msra.mxu0 0
        %355 = vmatpush.bf16.msra.mxu0 0
        %356 = vmatpush.bf16.msra.mxu0 0
        %357 = vmatpush.bf16.msra.mxu0 0
        %358 = vmatpush.bf16.msra.mxu0 0
        %359 = vmatpush.bf16.msra.mxu0 %v324
        %360 = vmatmul.bf16.gmra.mxu0 %v315
        %v361 = vpop.f32.mrf.mxu0
        %v362 = vadd.f32 0.0, %v361
        %v363 = vpop.f32.mrf.mxu0
        %364 = vdwg.mxu0
        %v365 = vadd.f32 %v267, %v336
        %v366 = vadd.f32 %v280, %v349
        %v367 = vadd.f32 %v293, %v362
        %s368 = scalar_lea.vmem %s1, 12
        %v369 = vld [vmem:[%s368] sm:$0xf]
        %370 = vst [vmem:[#allocation1] ss:$4 sm:$0xff] %v170
        %v371 = vld.sshfl [vmem:[#allocation1] sm:$0xff pattern:$0x73625140]
        %v373 = vld.sshfl [vmem:[#allocation1 + $0x8] sm:$0xff pattern:$0x73625140]
        %v375 = vld.sshfl [vmem:[#allocation1 + $0x10] sm:$0xff pattern:$0x73625140]
        %377 = vrot.lane.b32.xlu0 %v371, 110
        %v378 = vpop.permute.xlu0 %377
        %379 = vrot.lane.b32.xlu0 %v373, 110
        %v380 = vpop.permute.xlu0 %379
        %381 = vrot.lane.b32.xlu0 %v375, 110
        %v382 = vpop.permute.xlu0 %381
        %vm383 = vcmask 900096
        %v384 = vsel %vm383, %v378, %v380
        %v385 = vsel %vm383, %v380, %v382
        %v387 = vsel %vm191, %v369, 0
        %v390 = vsel %vm195, %v384, 0
        %v393 = vsel %vm195, %v385, 0
        %v396 = vsel %vm195, %v382, 0
        %398 = vmatpush.bf16.msra.mxu0 0
        %399 = vmatpush.bf16.msra.mxu0 0
        %400 = vmatpush.bf16.msra.mxu0 0
        %401 = vmatpush.bf16.msra.mxu0 0
        %402 = vmatpush.bf16.msra.mxu0 0
        %403 = vmatpush.bf16.msra.mxu0 0
        %404 = vmatpush.bf16.msra.mxu0 0
        %405 = vmatpush.bf16.msra.mxu0 %v390
        %406 = vmatmul.bf16.gmra.mxu0 %v387
        %v407 = vpop.f32.mrf.mxu0
        %v408 = vadd.f32 0.0, %v407
        %v409 = vpop.f32.mrf.mxu0
        %410 = vdwg.mxu0
        %411 = vmatpush.bf16.msra.mxu0 0
        %412 = vmatpush.bf16.msra.mxu0 0
        %413 = vmatpush.bf16.msra.mxu0 0
        %414 = vmatpush.bf16.msra.mxu0 0
        %415 = vmatpush.bf16.msra.mxu0 0
        %416 = vmatpush.bf16.msra.mxu0 0
        %417 = vmatpush.bf16.msra.mxu0 0
        %418 = vmatpush.bf16.msra.mxu0 %v393
        %419 = vmatmul.bf16.gmra.mxu0 %v387
        %v420 = vpop.f32.mrf.mxu0
        %v421 = vadd.f32 0.0, %v420
        %v422 = vpop.f32.mrf.mxu0
        %423 = vdwg.mxu0
        %424 = vmatpush.bf16.msra.mxu0 0
        %425 = vmatpush.bf16.msra.mxu0 0
        %426 = vmatpush.bf16.msra.mxu0 0
        %427 = vmatpush.bf16.msra.mxu0 0
        %428 = vmatpush.bf16.msra.mxu0 0
        %429 = vmatpush.bf16.msra.mxu0 0
        %430 = vmatpush.bf16.msra.mxu0 0
        %431 = vmatpush.bf16.msra.mxu0 %v396
        %432 = vmatmul.bf16.gmra.mxu0 %v387
        %v433 = vpop.f32.mrf.mxu0
        %v434 = vadd.f32 0.0, %v433
        %v435 = vpop.f32.mrf.mxu0
        %436 = vdwg.mxu0
        %v437 = vadd.f32 %v365, %v408
        %v438 = vadd.f32 %v366, %v421
        %v439 = vadd.f32 %v367, %v434
        %s440 = scalar_lea.vmem %s1, 16
        %v441 = vld [vmem:[%s440] sm:$0xf]
        %442 = vst [vmem:[#allocation1] ss:$4 sm:$0xff] %v170
        %v443 = vld.sshfl [vmem:[#allocation1] sm:$0xff pattern:$0x73625140]
        %v445 = vld.sshfl [vmem:[#allocation1 + $0x8] sm:$0xff pattern:$0x73625140]
        %v447 = vld.sshfl [vmem:[#allocation1 + $0x10] sm:$0xff pattern:$0x73625140]
        %449 = vrot.lane.b32.xlu0 %v443, 109
        %v450 = vpop.permute.xlu0 %449
        %451 = vrot.lane.b32.xlu0 %v445, 109
        %v452 = vpop.permute.xlu0 %451
        %453 = vrot.lane.b32.xlu0 %v447, 109
        %v454 = vpop.permute.xlu0 %453
        %vm455 = vcmask 891904
        %v456 = vsel %vm455, %v450, %v452
        %v457 = vsel %vm455, %v452, %v454
        %v459 = vsel %vm191, %v441, 0
        %v462 = vsel %vm195, %v456, 0
        %v465 = vsel %vm195, %v457, 0
        %v468 = vsel %vm195, %v454, 0
        %470 = vmatpush.bf16.msra.mxu0 0
        %471 = vmatpush.bf16.msra.mxu0 0
        %472 = vmatpush.bf16.msra.mxu0 0
        %473 = vmatpush.bf16.msra.mxu0 0
        %474 = vmatpush.bf16.msra.mxu0 0
        %475 = vmatpush.bf16.msra.mxu0 0
        %476 = vmatpush.bf16.msra.mxu0 0
        %477 = vmatpush.bf16.msra.mxu0 %v462
        %478 = vmatmul.bf16.gmra.mxu0 %v459
        %v479 = vpop.f32.mrf.mxu0
        %v480 = vadd.f32 0.0, %v479
        %v481 = vpop.f32.mrf.mxu0
        %482 = vdwg.mxu0
        %483 = vmatpush.bf16.msra.mxu0 0
        %484 = vmatpush.bf16.msra.mxu0 0
        %485 = vmatpush.bf16.msra.mxu0 0
        %486 = vmatpush.bf16.msra.mxu0 0
        %487 = vmatpush.bf16.msra.mxu0 0
        %488 = vmatpush.bf16.msra.mxu0 0
        %489 = vmatpush.bf16.msra.mxu0 0
        %490 = vmatpush.bf16.msra.mxu0 %v465
        %491 = vmatmul.bf16.gmra.mxu0 %v459
        %v492 = vpop.f32.mrf.mxu0
        %v493 = vadd.f32 0.0, %v492
        %v494 = vpop.f32.mrf.mxu0
        %495 = vdwg.mxu0
        %496 = vmatpush.bf16.msra.mxu0 0
        %497 = vmatpush.bf16.msra.mxu0 0
        %498 = vmatpush.bf16.msra.mxu0 0
        %499 = vmatpush.bf16.msra.mxu0 0
        %500 = vmatpush.bf16.msra.mxu0 0
        %501 = vmatpush.bf16.msra.mxu0 0
        %502 = vmatpush.bf16.msra.mxu0 0
        %503 = vmatpush.bf16.msra.mxu0 %v468
        %504 = vmatmul.bf16.gmra.mxu0 %v459
        %v505 = vpop.f32.mrf.mxu0
        %v506 = vadd.f32 0.0, %v505
        %v507 = vpop.f32.mrf.mxu0
        %508 = vdwg.mxu0
        %v509 = vadd.f32 %v437, %v480
        %v510 = vadd.f32 %v438, %v493
        %v511 = vadd.f32 %v439, %v506
        %s512 = scalar_lea.vmem %s1, 20
        %v513 = vld [vmem:[%s512] sm:$0xf]
        %514 = vst [vmem:[#allocation1] ss:$4 sm:$0xff] %v170
        %v515 = vld.sshfl [vmem:[#allocation1] sm:$0xff pattern:$0x73625140]
        %v517 = vld.sshfl [vmem:[#allocation1 + $0x8] sm:$0xff pattern:$0x73625140]
        %v519 = vld.sshfl [vmem:[#allocation1 + $0x10] sm:$0xff pattern:$0x73625140]
        %521 = vrot.lane.b32.xlu0 %v515, 108
        %v522 = vpop.permute.xlu0 %521
        %523 = vrot.lane.b32.xlu0 %v517, 108
        %v524 = vpop.permute.xlu0 %523
        %525 = vrot.lane.b32.xlu0 %v519, 108
        %v526 = vpop.permute.xlu0 %525
        %vm527 = vcmask 883712
        %v528 = vsel %vm527, %v522, %v524
        %v529 = vsel %vm527, %v524, %v526
        %v531 = vsel %vm191, %v513, 0
        %v534 = vsel %vm195, %v528, 0
        %v537 = vsel %vm195, %v529, 0
        %v540 = vsel %vm195, %v526, 0
        %542 = vmatpush.bf16.msra.mxu0 0
        %543 = vmatpush.bf16.msra.mxu0 0
        %544 = vmatpush.bf16.msra.mxu0 0
        %545 = vmatpush.bf16.msra.mxu0 0
        %546 = vmatpush.bf16.msra.mxu0 0
        %547 = vmatpush.bf16.msra.mxu0 0
        %548 = vmatpush.bf16.msra.mxu0 0
        %549 = vmatpush.bf16.msra.mxu0 %v534
        %550 = vmatmul.bf16.gmra.mxu0 %v531
        %v551 = vpop.f32.mrf.mxu0
        %v552 = vadd.f32 0.0, %v551
        %v553 = vpop.f32.mrf.mxu0
        %554 = vdwg.mxu0
        %555 = vmatpush.bf16.msra.mxu0 0
        %556 = vmatpush.bf16.msra.mxu0 0
        %557 = vmatpush.bf16.msra.mxu0 0
        %558 = vmatpush.bf16.msra.mxu0 0
        %559 = vmatpush.bf16.msra.mxu0 0
        %560 = vmatpush.bf16.msra.mxu0 0
        %561 = vmatpush.bf16.msra.mxu0 0
        %562 = vmatpush.bf16.msra.mxu0 %v537
        %563 = vmatmul.bf16.gmra.mxu0 %v531
        %v564 = vpop.f32.mrf.mxu0
        %v565 = vadd.f32 0.0, %v564
        %v566 = vpop.f32.mrf.mxu0
        %567 = vdwg.mxu0
        %568 = vmatpush.bf16.msra.mxu0 0
        %569 = vmatpush.bf16.msra.mxu0 0
        %570 = vmatpush.bf16.msra.mxu0 0
        %571 = vmatpush.bf16.msra.mxu0 0
        %572 = vmatpush.bf16.msra.mxu0 0
        %573 = vmatpush.bf16.msra.mxu0 0
        %574 = vmatpush.bf16.msra.mxu0 0
        %575 = vmatpush.bf16.msra.mxu0 %v540
        %576 = vmatmul.bf16.gmra.mxu0 %v531
        %v577 = vpop.f32.mrf.mxu0
        %v578 = vadd.f32 0.0, %v577
        %v579 = vpop.f32.mrf.mxu0
        %580 = vdwg.mxu0
        %v581 = vadd.f32 %v509, %v552
        %v582 = vadd.f32 %v510, %v565
        %v583 = vadd.f32 %v511, %v578
        %s584 = scalar_lea.vmem %s1, 24
        %v585 = vld [vmem:[%s584] sm:$0xf]
        %586 = vst [vmem:[#allocation1] ss:$4 sm:$0xff] %v170
        %v587 = vld.sshfl [vmem:[#allocation1] sm:$0xff pattern:$0x73625140]
        %v589 = vld.sshfl [vmem:[#allocation1 + $0x8] sm:$0xff pattern:$0x73625140]
        %v591 = vld.sshfl [vmem:[#allocation1 + $0x10] sm:$0xff pattern:$0x73625140]
        %593 = vrot.lane.b32.xlu0 %v587, 92
        %v594 = vpop.permute.xlu0 %593
        %595 = vrot.lane.b32.xlu0 %v589, 92
        %v596 = vpop.permute.xlu0 %595
        %597 = vrot.lane.b32.xlu0 %v591, 92
        %v598 = vpop.permute.xlu0 %597
        %vm599 = vcmask 752640
        %v600 = vsel %vm599, %v594, %v596
        %v601 = vsel %vm599, %v596, %v598
        %v603 = vsel %vm191, %v585, 0
        %v606 = vsel %vm195, %v600, 0
        %v609 = vsel %vm195, %v601, 0
        %v612 = vsel %vm195, %v598, 0
        %614 = vmatpush.bf16.msra.mxu0 0
        %615 = vmatpush.bf16.msra.mxu0 0
        %616 = vmatpush.bf16.msra.mxu0 0
        %617 = vmatpush.bf16.msra.mxu0 0
        %618 = vmatpush.bf16.msra.mxu0 0
        %619 = vmatpush.bf16.msra.mxu0 0
        %620 = vmatpush.bf16.msra.mxu0 0
        %621 = vmatpush.bf16.msra.mxu0 %v606
        %622 = vmatmul.bf16.gmra.mxu0 %v603
        %v623 = vpop.f32.mrf.mxu0
        %v624 = vadd.f32 0.0, %v623
        %v625 = vpop.f32.mrf.mxu0
        %626 = vdwg.mxu0
        %627 = vmatpush.bf16.msra.mxu0 0
        %628 = vmatpush.bf16.msra.mxu0 0
        %629 = vmatpush.bf16.msra.mxu0 0
        %630 = vmatpush.bf16.msra.mxu0 0
        %631 = vmatpush.bf16.msra.mxu0 0
        %632 = vmatpush.bf16.msra.mxu0 0
        %633 = vmatpush.bf16.msra.mxu0 0
        %634 = vmatpush.bf16.msra.mxu0 %v609
        %635 = vmatmul.bf16.gmra.mxu0 %v603
        %v636 = vpop.f32.mrf.mxu0
        %v637 = vadd.f32 0.0, %v636
        %v638 = vpop.f32.mrf.mxu0
        %639 = vdwg.mxu0
        %640 = vmatpush.bf16.msra.mxu0 0
        %641 = vmatpush.bf16.msra.mxu0 0
        %642 = vmatpush.bf16.msra.mxu0 0
        %643 = vmatpush.bf16.msra.mxu0 0
        %644 = vmatpush.bf16.msra.mxu0 0
        %645 = vmatpush.bf16.msra.mxu0 0
        %646 = vmatpush.bf16.msra.mxu0 0
        %647 = vmatpush.bf16.msra.mxu0 %v612
        %648 = vmatmul.bf16.gmra.mxu0 %v603
        %v649 = vpop.f32.mrf.mxu0
        %v650 = vadd.f32 0.0, %v649
        %v651 = vpop.f32.mrf.mxu0
        %652 = vdwg.mxu0
        %v653 = vadd.f32 %v581, %v624
        %v654 = vadd.f32 %v582, %v637
        %v655 = vadd.f32 %v583, %v650
        %s656 = scalar_lea.vmem %s1, 28
        %v657 = vld [vmem:[%s656] sm:$0xf]
        %658 = vst [vmem:[#allocation1] ss:$4 sm:$0xff] %v170
        %v659 = vld.sshfl [vmem:[#allocation1] sm:$0xff pattern:$0x73625140]
        %v661 = vld.sshfl [vmem:[#allocation1 + $0x8] sm:$0xff pattern:$0x73625140]
        %v663 = vld.sshfl [vmem:[#allocation1 + $0x10] sm:$0xff pattern:$0x73625140]
        %665 = vrot.lane.b32.xlu0 %v659, 91
        %v666 = vpop.permute.xlu0 %665
        %667 = vrot.lane.b32.xlu0 %v661, 91
        %v668 = vpop.permute.xlu0 %667
        %669 = vrot.lane.b32.xlu0 %v663, 91
        %v670 = vpop.permute.xlu0 %669
        %vm671 = vcmask 744448
        %v672 = vsel %vm671, %v666, %v668
        %v673 = vsel %vm671, %v668, %v670
        %v675 = vsel %vm191, %v657, 0
        %v678 = vsel %vm195, %v672, 0
        %v681 = vsel %vm195, %v673, 0
        %v684 = vsel %vm195, %v670, 0
        %686 = vmatpush.bf16.msra.mxu0 0
        %687 = vmatpush.bf16.msra.mxu0 0
        %688 = vmatpush.bf16.msra.mxu0 0
        %689 = vmatpush.bf16.msra.mxu0 0
        %690 = vmatpush.bf16.msra.mxu0 0
        %691 = vmatpush.bf16.msra.mxu0 0
        %692 = vmatpush.bf16.msra.mxu0 0
        %693 = vmatpush.bf16.msra.mxu0 %v678
        %694 = vmatmul.bf16.gmra.mxu0 %v675
        %v695 = vpop.f32.mrf.mxu0
        %v696 = vadd.f32 0.0, %v695
        %v697 = vpop.f32.mrf.mxu0
        %698 = vdwg.mxu0
        %699 = vmatpush.bf16.msra.mxu0 0
        %700 = vmatpush.bf16.msra.mxu0 0
        %701 = vmatpush.bf16.msra.mxu0 0
        %702 = vmatpush.bf16.msra.mxu0 0
        %703 = vmatpush.bf16.msra.mxu0 0
        %704 = vmatpush.bf16.msra.mxu0 0
        %705 = vmatpush.bf16.msra.mxu0 0
        %706 = vmatpush.bf16.msra.mxu0 %v681
        %707 = vmatmul.bf16.gmra.mxu0 %v675
        %v708 = vpop.f32.mrf.mxu0
        %v709 = vadd.f32 0.0, %v708
        %v710 = vpop.f32.mrf.mxu0
        %711 = vdwg.mxu0
        %712 = vmatpush.bf16.msra.mxu0 0
        %713 = vmatpush.bf16.msra.mxu0 0
        %714 = vmatpush.bf16.msra.mxu0 0
        %715 = vmatpush.bf16.msra.mxu0 0
        %716 = vmatpush.bf16.msra.mxu0 0
        %717 = vmatpush.bf16.msra.mxu0 0
        %718 = vmatpush.bf16.msra.mxu0 0
        %719 = vmatpush.bf16.msra.mxu0 %v684
        %720 = vmatmul.bf16.gmra.mxu0 %v675
        %v721 = vpop.f32.mrf.mxu0
        %v722 = vadd.f32 0.0, %v721
        %v723 = vpop.f32.mrf.mxu0
        %724 = vdwg.mxu0
        %v725 = vadd.f32 %v653, %v696
        %v726 = vadd.f32 %v654, %v709
        %v727 = vadd.f32 %v655, %v722
        %s728 = scalar_lea.vmem %s1, 32
        %v729 = vld [vmem:[%s728] sm:$0xf]
        %730 = vst [vmem:[#allocation1] ss:$4 sm:$0xff] %v170
        %v731 = vld.sshfl [vmem:[#allocation1] sm:$0xff pattern:$0x73625140]
        %v733 = vld.sshfl [vmem:[#allocation1 + $0x8] sm:$0xff pattern:$0x73625140]
        %v735 = vld.sshfl [vmem:[#allocation1 + $0x10] sm:$0xff pattern:$0x73625140]
        %737 = vrot.lane.b32.xlu0 %v731, 90
        %v738 = vpop.permute.xlu0 %737
        %739 = vrot.lane.b32.xlu0 %v733, 90
        %v740 = vpop.permute.xlu0 %739
        %741 = vrot.lane.b32.xlu0 %v735, 90
        %v742 = vpop.permute.xlu0 %741
        %vm743 = vcmask 736256
        %v744 = vsel %vm743, %v738, %v740
        %v745 = vsel %vm743, %v740, %v742
        %v747 = vsel %vm191, %v729, 0
        %v750 = vsel %vm195, %v744, 0
        %v753 = vsel %vm195, %v745, 0
        %v756 = vsel %vm195, %v742, 0
        %758 = vmatpush.bf16.msra.mxu0 0
        %759 = vmatpush.bf16.msra.mxu0 0
        %760 = vmatpush.bf16.msra.mxu0 0
        %761 = vmatpush.bf16.msra.mxu0 0
        %762 = vmatpush.bf16.msra.mxu0 0
        %763 = vmatpush.bf16.msra.mxu0 0
        %764 = vmatpush.bf16.msra.mxu0 0
        %765 = vmatpush.bf16.msra.mxu0 %v750
        %766 = vmatmul.bf16.gmra.mxu0 %v747
        %v767 = vpop.f32.mrf.mxu0
        %v768 = vadd.f32 0.0, %v767
        %v769 = vpop.f32.mrf.mxu0
        %770 = vdwg.mxu0
        %771 = vmatpush.bf16.msra.mxu0 0
        %772 = vmatpush.bf16.msra.mxu0 0
        %773 = vmatpush.bf16.msra.mxu0 0
        %774 = vmatpush.bf16.msra.mxu0 0
        %775 = vmatpush.bf16.msra.mxu0 0
        %776 = vmatpush.bf16.msra.mxu0 0
        %777 = vmatpush.bf16.msra.mxu0 0
        %778 = vmatpush.bf16.msra.mxu0 %v753
        %779 = vmatmul.bf16.gmra.mxu0 %v747
        %v780 = vpop.f32.mrf.mxu0
        %v781 = vadd.f32 0.0, %v780
        %v782 = vpop.f32.mrf.mxu0
        %783 = vdwg.mxu0
        %784 = vmatpush.bf16.msra.mxu0 0
        %785 = vmatpush.bf16.msra.mxu0 0
        %786 = vmatpush.bf16.msra.mxu0 0
        %787 = vmatpush.bf16.msra.mxu0 0
        %788 = vmatpush.bf16.msra.mxu0 0
        %789 = vmatpush.bf16.msra.mxu0 0
        %790 = vmatpush.bf16.msra.mxu0 0
        %791 = vmatpush.bf16.msra.mxu0 %v756
        %792 = vmatmul.bf16.gmra.mxu0 %v747
        %v793 = vpop.f32.mrf.mxu0
        %v794 = vadd.f32 0.0, %v793
        %v795 = vpop.f32.mrf.mxu0
        %796 = vdwg.mxu0
        %v797 = vadd.f32 %v725, %v768
        %v798 = vadd.f32 %v726, %v781
        %v799 = vadd.f32 %v727, %v794
        %v800 = vld [vmem:[%s2] sm:$0xff]
        %802 = vset.pattern.permute.xlu0 0
        %803 = vperm.xlu0 %802, %v800
        %v804 = vpop.permute.xlu0 %803
        %v806 = vadd.f32 %v797, %v804
        %v807 = vadd.f32 %v798, %v804
        %v808 = vadd.f32 %v799, %v804
        %809 = vst [vmem:[%s163] sm:$0xff] %v806
        %810 = vst [vmem:[%s163 + $0x8] sm:$0xff] %v807
        %vm811 = vcmask 261120
        %812 = vst.msk [vmem:[%s163 + $0x10] sm:$0xff] %vm811, %v808
        %s813 = sand.u32 %s93, 1
        %s814 = scalar_lea.sflag [#allocation3], %s813
        %s815 = sand.u32 %s93, 1
        %s816 = smul.addr %s815, 24
        %s817 = scalar_lea.vmem [#allocation2], %s816
        // Predicated region
        $region33: #{tpu_custom_call.1} parent=31 // pred_check
          %p818 = pneg %p103
        $region34: #{tpu_custom_call.1} parent=31 // pred_check_branch
          %820 = sbr.rel (%p818) target = $region36
        $region35: #{tpu_custom_call.1} parent=31 // pred_region
          %822 = vsyncadd %s814, 0
          %s823 = smul.addr %s17, 3
          %s824 = smul.addr %s823, 8
          %s825 = scalar_lea.hbm %s3, %s824
          %s827 = sshll.u32 %s817, 4
          %s828 = int_to_ptr.vmem [resolvable:$true] %s827
          %s829 = sshll.u32 %s825, 4
          %s830 = int_to_ptr.hbm [resolvable:$true] %s829
          %832 = dma.vmem_to_hbm [thread:$0]  %s828, 384, %s830, %s814
        $region36: #{tpu_custom_call.1} parent=31 // pred_fallthru
          _
      $region32: #{tpu_custom_call.1} parent=5 // pred_fallthru
        _
      %p833 = scmp.le.s32.totalorder 2, %s12
      // Predicated region
      $region37: #{tpu_custom_call.1} parent=5 // pred_check
        %p834 = pneg %p833
      $region38: #{tpu_custom_call.1} parent=5 // pred_check_branch
        %836 = sbr.rel (%p834) target = $region40
      $region39: #{tpu_custom_call.1} parent=5 // pred_region
        %s837 = ssub.s32 %s12, 2
        // Predicated region
        $region41: #{tpu_custom_call.1} parent=39 // pred_check
          %p838 = pneg %p109
        $region42: #{tpu_custom_call.1} parent=39 // pred_check_branch
          %840 = sbr.rel (%p838) target = $region44
        $region43: #{tpu_custom_call.1} parent=39 // pred_region
          %s841 = sand.u32 %s94, 1
          %s842 = scalar_lea.sflag [#allocation3], %s841
          %s843 = sand.u32 %s94, 1
          %s844 = smul.addr %s843, 24
          %s845 = scalar_lea.vmem [#allocation2], %s844
          %847 = dma.done %s842, 384
        $region44: #{tpu_custom_call.1} parent=39 // pred_fallthru
          _
      $region40: #{tpu_custom_call.1} parent=5 // pred_fallthru
        _
    $region6: #{tpu_custom_call.1} parent=1 // loop_footer
      %s16 = sadd.s32 1, %s12
    $region7: #{tpu_custom_call.1} parent=1 // loop_footer_branch
      %11 = sbr.rel target = $region3
    $region8: #{tpu_custom_call.1} parent=1 // loop_exit
      _
    %848 = vsyncpa [#allocation3], 1
    %s849 = scalar_lea.sflag [#allocation3], 1
    %850 = vsyncpa %s849, 1

</llo_original>
